<compile_context>
chip_gen: v6e
topology: v6e:2x2x1
jax: 0.10.0
libtpu: 0.0.40
codegen_flags: <defaults>
</compile_context>

<pallas_src>
import jax
import jax.numpy as jnp
from jax.experimental import pallas as pl
from jax.experimental.pallas import tpu as pltpu


def ca_kernel(x_ref, w1_ref, w2_ref, o_ref):
    # x_ref : (1, C, HW)  one batch element; channels on sublanes, HW on lanes
    # w1_ref: (Ch, C)     f1 1x1-conv weight (squeeze)
    # w2_ref: (C, Ch)     f2 1x1-conv weight (excite)
    # o_ref : (1, C, HW)
    x = x_ref[0].astype(jnp.float32)                           # (C, HW)

    # Adaptive avg / max pool to 1x1 -> per-channel scalars (cross-lane XLU reduces).
    avg = jnp.mean(x, axis=-1, keepdims=True)                  # (C, 1)
    mx = jnp.max(x, axis=-1, keepdims=True)                    # (C, 1)
    pooled = jnp.concatenate([avg, mx], axis=-1)               # (C, 2): branches share the MLP

    # Shared bottleneck MLP: 1x1 convs on a 1x1 feature map == tiny matmuls.
    h = jnp.dot(w1_ref[...], pooled, preferred_element_type=jnp.float32)   # (Ch, 2)
    h = jnp.maximum(h, 0.0)                                                # ReLU
    o = jnp.dot(w2_ref[...], h, preferred_element_type=jnp.float32)        # (C, 2)

    # sigmoid(avg_out + max_out) -> per-channel gate, broadcast over the HW lanes.
    gate = jax.nn.sigmoid(o[:, 0:1] + o[:, 1:2])               # (C, 1)
    o_ref[0] = (x * gate).astype(o_ref.dtype)


def ca_forward(x_nchw, f1_weight, f2_weight):
    # x_nchw   : [N, C, H, W]
    # f1_weight: [C//r, C, 1, 1]   (Conv2d, 1x1, no bias)
    # f2_weight: [C, C//r, 1, 1]
    N, C, H, W = x_nchw.shape
    Ch = f1_weight.shape[0]
    HW = H * W

    x = x_nchw.reshape(N, C, HW)                       # contiguous reshape, stays NCHW
    w1 = f1_weight.reshape(Ch, C).astype(jnp.float32)
    w2 = f2_weight.reshape(C, Ch).astype(jnp.float32)

    out = pl.pallas_call(
        ca_kernel,
        out_shape=jax.ShapeDtypeStruct((N, C, HW), x_nchw.dtype),
        grid_spec=pltpu.PrefetchScalarGridSpec(
            num_scalar_prefetch=0,
            grid=(N,),                                  # N >= 2 -> shards across megacore TCs
            in_specs=[
                pl.BlockSpec((1, C, HW), lambda n: (n, 0, 0)),
                pl.BlockSpec((Ch, C), lambda n: (0, 0)),   # weights resident across steps
                pl.BlockSpec((C, Ch), lambda n: (0, 0)),
            ],
            out_specs=pl.BlockSpec((1, C, HW), lambda n: (n, 0, 0)),
        ),
        compiler_params=pltpu.CompilerParams(
            dimension_semantics=("parallel",)),
    )(x, w1, w2)

    return out.reshape(N, C, H, W)


if __name__ == "__main__":
    # CA(in_planes=64, ratio=16): f1: 64 -> 4, f2: 4 -> 64. Small NCHW input.
    N, C, H, W = 2, 64, 16, 16
    ratio = 16
    Ch = C // ratio

    key = jax.random.PRNGKey(0)
    kx, k1, k2 = jax.random.split(key, 3)
    x = jax.random.normal(kx, (N, C, H, W), dtype=jnp.float32)
    f1_w = 0.1 * jax.random.normal(k1, (Ch, C, 1, 1), dtype=jnp.float32)
    f2_w = 0.1 * jax.random.normal(k2, (C, Ch, 1, 1), dtype=jnp.float32)

    y = ca_forward(x, f1_w, f2_w)
    jax.block_until_ready(y)

    # Pure-JAX reference for a correctness spot-check.
    def ca_ref(xr, w1r, w2r):
        w1m = w1r.reshape(w1r.shape[0], -1)            # (Ch, C)
        w2m = w2r.reshape(w2r.shape[0], -1)            # (C, Ch)
        avg = jnp.mean(xr, axis=(2, 3))                # (N, C)
        mx = jnp.max(xr, axis=(2, 3))                  # (N, C)

        def mlp(p):
            h = jnp.maximum(p @ w1m.T, 0.0)            # (N, Ch)
            return h @ w2m.T                           # (N, C)

        gate = jax.nn.sigmoid(mlp(avg) + mlp(mx))      # (N, C)
        return xr * gate[:, :, None, None]

    ref = ca_ref(x, f1_w, f2_w)
    assert y.shape == (N, C, H, W)
    assert jnp.allclose(y, ref, atol=2e-2, rtol=2e-2), float(jnp.max(jnp.abs(y - ref)))
    print("KERNEL_OK")
</pallas_src>

<mosaic_0001>
module attributes {stable_mosaic.version = 11 : i64} {
  func.func @ca_kernel(%arg0: i32, %arg1: memref<1x64x256xf32, #tpu.memory_space<vmem>>, %arg2: memref<4x64xf32, #tpu.memory_space<vmem>>, %arg3: memref<64x4xf32, #tpu.memory_space<vmem>>, %arg4: memref<1x64x256xf32, #tpu.memory_space<vmem>>) attributes {dimension_semantics = [#tpu.dimension_semantics<parallel>], iteration_bounds = array<i64: 2>, scalar_prefetch = 0 : i64, scratch_operands = 0 : i64, tpu.core_type = #tpu.core_type<tc>, window_params = [{transform_indices = @transform_0, window_bounds = array<i64: 1, 64, 256>}, {pipeline_mode = #tpu.pipeline_mode<synchronous>, transform_indices = @transform_1, window_bounds = array<i64: 4, 64>}, {pipeline_mode = #tpu.pipeline_mode<synchronous>, transform_indices = @transform_2, window_bounds = array<i64: 64, 4>}, {transform_indices = @transform_3, window_bounds = array<i64: 1, 64, 256>}]} {
    %c0 = arith.constant 0 : index
    %c0_0 = arith.constant 0 : index
    %c0_1 = arith.constant 0 : index
    %0 = vector.load %arg1[%c0, %c0_0, %c0_1] : memref<1x64x256xf32, #tpu.memory_space<vmem>>, vector<1x64x256xf32>
    %1 = vector.shape_cast %0 : vector<1x64x256xf32> to vector<64x256xf32>
    %cst = arith.constant dense<0.000000e+00> : vector<64xf32>
    %2 = vector.multi_reduction <add>, %1, %cst [1] : vector<64x256xf32> to vector<64xf32>
    %3 = vector.shape_cast %2 : vector<64xf32> to vector<64x1xf32>
    %cst_2 = arith.constant 2.560000e+02 : f32
    %4 = vector.broadcast %cst_2 : f32 to vector<64x1xf32>
    %5 = arith.divf %3, %4 : vector<64x1xf32>
    %cst_3 = arith.constant dense<0xFF800000> : vector<64xf32>
    %6 = vector.multi_reduction <maximumf>, %1, %cst_3 [1] : vector<64x256xf32> to vector<64xf32>
    %7 = vector.shape_cast %6 : vector<64xf32> to vector<64x1xf32>
    %8 = tpu.concatenate %5, %7 in 1 : vector<64x1xf32>, vector<64x1xf32> -> vector<64x2xf32>
    %c0_4 = arith.constant 0 : index
    %c0_5 = arith.constant 0 : index
    %9 = vector.load %arg2[%c0_4, %c0_5] : memref<4x64xf32, #tpu.memory_space<vmem>>, vector<4x64xf32>
    %cst_6 = arith.constant dense<0.000000e+00> : vector<4x2xf32>
    %10 = tpu.matmul %9, %8, %cst_6 {dimension_numbers = #tpu.dot_dimension_numbers<[1], [0], [0], [1], [0, 0, 1, 1], [], []>} : vector<4x64xf32>, vector<64x2xf32>, vector<4x2xf32> -> vector<4x2xf32>
    %cst_7 = arith.constant 0.000000e+00 : f32
    %11 = vector.broadcast %cst_7 : f32 to vector<4x2xf32>
    %12 = arith.maximumf %10, %11 : vector<4x2xf32>
    %c0_8 = arith.constant 0 : index
    %c0_9 = arith.constant 0 : index
    %13 = vector.load %arg3[%c0_8, %c0_9] : memref<64x4xf32, #tpu.memory_space<vmem>>, vector<64x4xf32>
    %cst_10 = arith.constant dense<0.000000e+00> : vector<64x2xf32>
    %14 = tpu.matmul %13, %12, %cst_10 {dimension_numbers = #tpu.dot_dimension_numbers<[1], [0], [0], [1], [0, 0, 1, 1], [], []>} : vector<64x4xf32>, vector<4x2xf32>, vector<64x2xf32> -> vector<64x2xf32>
    %15 = vector.extract_strided_slice %14 {offsets = [0, 0], sizes = [64, 1], strides = [1, 1]} : vector<64x2xf32> to vector<64x1xf32>
    %16 = vector.extract_strided_slice %14 {offsets = [0, 1], sizes = [64, 1], strides = [1, 1]} : vector<64x2xf32> to vector<64x1xf32>
    %17 = arith.addf %15, %16 : vector<64x1xf32>
    %18 = arith.negf %17 : vector<64x1xf32>
    %19 = math.exp %18 : vector<64x1xf32>
    %cst_11 = arith.constant 1.000000e+00 : f32
    %20 = vector.broadcast %cst_11 : f32 to vector<64x1xf32>
    %21 = arith.addf %20, %19 : vector<64x1xf32>
    %22 = arith.divf %20, %21 : vector<64x1xf32>
    %23 = vector.broadcast %22 : vector<64x1xf32> to vector<64x256xf32>
    %24 = arith.mulf %1, %23 : vector<64x256xf32>
    %c0_12 = arith.constant 0 : index
    %c0_13 = arith.constant 0 : index
    %c0_14 = arith.constant 0 : index
    %25 = vector.load %arg4[%c0_12, %c0_13, %c0_14] : memref<1x64x256xf32, #tpu.memory_space<vmem>>, vector<1x64x256xf32>
    %26 = vector.shape_cast %25 : vector<1x64x256xf32> to vector<64x256xf32>
    %27 = vector.shape_cast %24 : vector<64x256xf32> to vector<1x64x256xf32>
    tpu.vector_store %arg4[%c0_12, %c0_13, %c0_14], %27 {strides = array<i32>} : memref<1x64x256xf32, #tpu.memory_space<vmem>>, vector<1x64x256xf32>,
    return
  }
  func.func @transform_0(%arg0: i32) -> (i32, i32, i32) {
    %c0_i32 = arith.constant 0 : i32
    %c0_i32_0 = arith.constant 0 : i32
    %c0_i32_1 = arith.constant 0 : i32
    return %arg0, %c0_i32, %c0_i32_0 : i32, i32, i32
  }
  func.func @transform_1(%arg0: i32) -> (i32, i32) {
    %c0_i32 = arith.constant 0 : i32
    %c0_i32_0 = arith.constant 0 : i32
    %c0_i32_1 = arith.constant 0 : i32
    return %c0_i32, %c0_i32_0 : i32, i32
  }
  func.func @transform_2(%arg0: i32) -> (i32, i32) {
    %c0_i32 = arith.constant 0 : i32
    %c0_i32_0 = arith.constant 0 : i32
    %c0_i32_1 = arith.constant 0 : i32
    return %c0_i32, %c0_i32_0 : i32, i32
  }
  func.func @transform_3(%arg0: i32) -> (i32, i32, i32) {
    %c0_i32 = arith.constant 0 : i32
    %c0_i32_0 = arith.constant 0 : i32
    %c0_i32_1 = arith.constant 0 : i32
    return %arg0, %c0_i32, %c0_i32_0 : i32, i32, i32
  }
}

</mosaic_0001>

<llo_original>
// kernel: tpu_custom_call.1
$region0: #{tpu_custom_call.1}
  #allocation0 [shape = 'u32[]', space=smem, size = 0x4, offset = 0x4, fixed_abs, tag = 'smem constant byte address 0x4 - core index']
  #allocation1 [shape = 'u32[144,128]{1,0:T(1,128)}', space=vmem, size = 0x12000, scoped, tag = 'internal scratch']
  %s0 = inlined_call_operand.hbm [shape: f32[2,64,256], index: 0, kind: input, shape index: {}]
  %s1 = inlined_call_operand.vmem [shape: f32[4,64], index: 1, kind: input, shape index: {}]
  %s2 = inlined_call_operand.vmem [shape: f32[64,4], index: 2, kind: input, shape index: {}]
  %s3 = inlined_call_operand.hbm [shape: f32[2,64,256], index: 3, kind: output, shape index: {}]
  %s4 = sld [smem:[#allocation0]]
  $region49: #{tpu_custom_call.1} parent=0
    _
  %s6 = ssub.s32 1, %s4
  %s7 = scalar_select 0, %s6, %s4
  $region1: #{tpu_custom_call.1} parent=0
    #allocation2 [shape = 'u8[131072]{0}', space=vmem, size = 0x20000, scoped, tag = 'input window, operand 0']
    #allocation3 [shape = 's32[2]{0}', space=sflag, size = 0x8, scoped, tag = 'scoped memory for tpu_custom_call.1']
    #allocation4 [shape = 's32[2]{0}', space=sflag, size = 0x8, scoped, tag = 'scoped memory for tpu_custom_call.1']
    #allocation5 [shape = 'u8[131072]{0}', space=vmem, size = 0x20000, scoped, tag = 'output window, operand 0']
    %8 = vsyncpa [#allocation3], 0
    %s9 = scalar_lea.sflag [#allocation3], 1
    %10 = vsyncpa %s9, 0
    %11 = vsyncpa [#allocation4], 0
    %s12 = scalar_lea.sflag [#allocation4], 1
    %13 = vsyncpa %s12, 0
    loop: start=0, step=1, limit=4
    $region2: #{tpu_custom_call.1} parent=1 // loop_pre_header
      _
    $region3: #{tpu_custom_call.1} parent=1 // loop_header
      %s15 = sphi 0, %s19
      %p16 = scmp.ge.s32.totalorder %s15, 4
      %s25 = sphi 0, %s27
      %s28 = sphi 0, %s25
      %s29 = sphi 0, %s28
      %s45 = sphi 0, %s29
      %s49 = sphi 0, %s49
      %s51 = sphi 0, %s49
      %s52 = sphi 0, %s51
      %s66 = sphi 0, %s52
      %s70 = sphi 0, %s70
      %s72 = sphi 0, %s70
      %s73 = sphi 0, %s72
      %s87 = sphi 0, %s73
      %s93 = sphi 0, %s95
      %s96 = sphi 0, %s93
      %s97 = sphi 0, %s96
      %s113 = sphi 0, %s97
    $region4: #{tpu_custom_call.1} parent=1 // loop_header_branch
      %18 = sbr.rel (%p16) target = $region8
    $region5: #{tpu_custom_call.1} parent=1 // loop_body
      %s20 = ssub.s32 %s15, 1
      %s21 = ssub.s32 %s15, 2
      %s22 = sadd.s32 %s15, 1
      %s23 = ssub.s32 %s15, %s22
      %p24 = scmp.eq.s32.totalorder %s23, 0
      %s26 = sadd.s32 %s25, 1
      %s27 = scalar_select %p24, %s25, %s26
      %p30 = pneg %p24
      %p31 = scmp.eq.s32.totalorder %s15, 1
      %p32 = por %p30, %p31
      %p33 = scmp.ne.s32.totalorder %s25, %s28
      %p34 = scmp.eq.s32.totalorder %s15, 0
      %p35 = por %p33, %p34
      %p36 = scmp.ne.s32.totalorder %s25, %s28
      %p37 = scmp.eq.s32.totalorder %s20, 1
      %p38 = por %p36, %p37
      %p39 = scmp.ne.s32.totalorder %s28, %s29
      %p40 = scmp.eq.s32.totalorder %s20, 0
      %p41 = por %p39, %p40
      %p42 = scmp.ne.s32.totalorder %s28, %s29
      %p43 = scmp.eq.s32.totalorder %s21, 1
      %p44 = por %p42, %p43
      %p46 = scmp.ne.s32.totalorder %s29, %s45
      %p47 = scmp.eq.s32.totalorder %s21, 0
      %p48 = por %p46, %p47
      %s50 = sadd.s32 %s49, 1
      %p53 = scmp.eq.s32.totalorder %s15, 1
      %p54 = scmp.ne.s32.totalorder %s49, %s51
      %p55 = scmp.eq.s32.totalorder %s15, 0
      %p56 = por %p54, %p55
      %p57 = scmp.ne.s32.totalorder %s49, %s51
      %p58 = scmp.eq.s32.totalorder %s20, 1
      %p59 = por %p57, %p58
      %p60 = scmp.ne.s32.totalorder %s51, %s52
      %p61 = scmp.eq.s32.totalorder %s20, 0
      %p62 = por %p60, %p61
      %p63 = scmp.ne.s32.totalorder %s51, %s52
      %p64 = scmp.eq.s32.totalorder %s21, 1
      %p65 = por %p63, %p64
      %p67 = scmp.ne.s32.totalorder %s52, %s66
      %p68 = scmp.eq.s32.totalorder %s21, 0
      %p69 = por %p67, %p68
      %s71 = sadd.s32 %s70, 1
      %p74 = scmp.eq.s32.totalorder %s15, 1
      %p75 = scmp.ne.s32.totalorder %s70, %s72
      %p76 = scmp.eq.s32.totalorder %s15, 0
      %p77 = por %p75, %p76
      %p78 = scmp.ne.s32.totalorder %s70, %s72
      %p79 = scmp.eq.s32.totalorder %s20, 1
      %p80 = por %p78, %p79
      %p81 = scmp.ne.s32.totalorder %s72, %s73
      %p82 = scmp.eq.s32.totalorder %s20, 0
      %p83 = por %p81, %p82
      %p84 = scmp.ne.s32.totalorder %s72, %s73
      %p85 = scmp.eq.s32.totalorder %s21, 1
      %p86 = por %p84, %p85
      %p88 = scmp.ne.s32.totalorder %s73, %s87
      %p89 = scmp.eq.s32.totalorder %s21, 0
      %p90 = por %p88, %p89
      %s91 = ssub.s32 %s15, %s22
      %p92 = scmp.eq.s32.totalorder %s91, 0
      %s94 = sadd.s32 %s93, 1
      %s95 = scalar_select %p92, %s93, %s94
      %p98 = pneg %p92
      %p99 = scmp.eq.s32.totalorder %s15, 1
      %p100 = por %p98, %p99
      %p101 = scmp.ne.s32.totalorder %s93, %s96
      %p102 = scmp.eq.s32.totalorder %s15, 0
      %p103 = por %p101, %p102
      %p104 = scmp.ne.s32.totalorder %s93, %s96
      %p105 = scmp.eq.s32.totalorder %s20, 1
      %p106 = por %p104, %p105
      %p107 = scmp.ne.s32.totalorder %s96, %s97
      %p108 = scmp.eq.s32.totalorder %s20, 0
      %p109 = por %p107, %p108
      %p110 = scmp.ne.s32.totalorder %s96, %s97
      %p111 = scmp.eq.s32.totalorder %s21, 1
      %p112 = por %p110, %p111
      %p114 = scmp.ne.s32.totalorder %s97, %s113
      %p115 = scmp.eq.s32.totalorder %s21, 0
      %p116 = por %p114, %p115
      %p117 = scmp.le.s32.totalorder 1, %s15
      %p118 = scmp.lt.s32.totalorder %s15, 3
      %p119 = pnand %p117, %p118
      %p120 = pneg %p119
      // Predicated region
      $region9: #{tpu_custom_call.1} parent=5 // pred_check
        _
      $region10: #{tpu_custom_call.1} parent=5 // pred_check_branch
        %122 = sbr.rel (%p119) target = $region12
      $region11: #{tpu_custom_call.1} parent=5 // pred_region
        %s123 = ssub.s32 %s15, 1
        // Predicated region
        $region13: #{tpu_custom_call.1} parent=11 // pred_check
          %p124 = pneg %p62
        $region14: #{tpu_custom_call.1} parent=11 // pred_check_branch
          %126 = sbr.rel (%p124) target = $region16
        $region15: #{tpu_custom_call.1} parent=11 // pred_region
          _
        $region16: #{tpu_custom_call.1} parent=11 // pred_fallthru
          _
        // Predicated region
        $region17: #{tpu_custom_call.1} parent=11 // pred_check
          %p127 = pneg %p83
        $region18: #{tpu_custom_call.1} parent=11 // pred_check_branch
          %129 = sbr.rel (%p127) target = $region20
        $region19: #{tpu_custom_call.1} parent=11 // pred_region
          _
        $region20: #{tpu_custom_call.1} parent=11 // pred_fallthru
          _
      $region12: #{tpu_custom_call.1} parent=5 // pred_fallthru
        _
      %p130 = scmp.lt.s32.totalorder %s15, 2
      // Predicated region
      $region21: #{tpu_custom_call.1} parent=5 // pred_check
        %p131 = pneg %p130
      $region22: #{tpu_custom_call.1} parent=5 // pred_check_branch
        %133 = sbr.rel (%p131) target = $region24
      $region23: #{tpu_custom_call.1} parent=5 // pred_region
        // Predicated region
        $region25: #{tpu_custom_call.1} parent=23 // pred_check
          %p134 = pneg %p35
        $region26: #{tpu_custom_call.1} parent=23 // pred_check_branch
          %136 = sbr.rel (%p134) target = $region28
        $region27: #{tpu_custom_call.1} parent=23 // pred_region
          %s137 = sand.u32 %s25, 1
          %s138 = scalar_lea.sflag [#allocation3], %s137
          %s139 = sand.u32 %s25, 1
          %s140 = smul.addr %s139, 128
          %s141 = scalar_lea.vmem [#allocation2], %s140
          %s143 = ssub.s32 2048, 2048
          %144 = vsyncadd %s138, %s143
          %s145 = smul.addr %s15, 16
          %s146 = smul.addr %s145, 128
          %s147 = scalar_lea.hbm %s0, %s146
          %s148 = sshll.u32 %s141, 4
          %s149 = int_to_ptr.vmem [resolvable:$true] %s148
          %154 = dma.hbm_to_vmem [thread:$0]  %s147, 2048, %s149, %s138, 256, 256, 16
        $region28: #{tpu_custom_call.1} parent=23 // pred_fallthru
          _
      $region24: #{tpu_custom_call.1} parent=5 // pred_fallthru
        _
      %p155 = scmp.le.s32.totalorder 1, %s15
      %p156 = scmp.lt.s32.totalorder %s15, 3
      %p157 = pnand %p155, %p156
      %p158 = pneg %p157
      // Predicated region
      $region29: #{tpu_custom_call.1} parent=5 // pred_check
        _
      $region30: #{tpu_custom_call.1} parent=5 // pred_check_branch
        %160 = sbr.rel (%p157) target = $region32
      $region31: #{tpu_custom_call.1} parent=5 // pred_region
        %s161 = ssub.s32 %s15, 1
        %s162 = sand.u32 %s28, 1
        %s163 = scalar_lea.sflag [#allocation3], %s162
        %s164 = sand.u32 %s28, 1
        %s165 = smul.addr %s164, 128
        %s166 = scalar_lea.vmem [#allocation2], %s165
        // Predicated region
        $region33: #{tpu_custom_call.1} parent=31 // pred_check
          %p167 = pneg %p41
        $region34: #{tpu_custom_call.1} parent=31 // pred_check_branch
          %169 = sbr.rel (%p167) target = $region36
        $region35: #{tpu_custom_call.1} parent=31 // pred_region
          %170 = dma.done %s163, 2048
        $region36: #{tpu_custom_call.1} parent=31 // pred_fallthru
          _
        %s171 = sand.u32 %s28, 1
        %s172 = scalar_lea.sflag [#allocation3], %s171
        %s173 = sand.u32 %s28, 1
        %s174 = smul.addr %s173, 128
        %s175 = scalar_lea.vmem [#allocation2], %s174
        %p176 = pneg %p41
        %p177 = pneg %p38
        %p178 = pneg %p62
        %p179 = pneg %p59
        %p180 = pneg %p83
        %p181 = pneg %p80
        %p182 = pneg %p109
        %p183 = pneg %p106
        %s184 = sand.u32 %s96, 1
        %s185 = scalar_lea.sflag [#allocation4], %s184
        %s186 = sand.u32 %s96, 1
        %s187 = smul.addr %s186, 128
        %s188 = scalar_lea.vmem [#allocation5], %s187
        %v189 = vld [vmem:[%s166] sm:$0xff]
        %v190 = vld [vmem:[%s166 + $0x8] sm:$0xff]
        %v191 = vld [vmem:[%s166 + $0x10] sm:$0xff]
        %v192 = vld [vmem:[%s166 + $0x18] sm:$0xff]
        %v193 = vld [vmem:[%s166 + $0x20] sm:$0xff]
        %v194 = vld [vmem:[%s166 + $0x28] sm:$0xff]
        %v195 = vld [vmem:[%s166 + $0x30] sm:$0xff]
        %v196 = vld [vmem:[%s166 + $0x38] sm:$0xff]
        %v197 = vld [vmem:[%s166 + $0x40] sm:$0xff]
        %v198 = vld [vmem:[%s166 + $0x48] sm:$0xff]
        %v199 = vld [vmem:[%s166 + $0x50] sm:$0xff]
        %v200 = vld [vmem:[%s166 + $0x58] sm:$0xff]
        %v201 = vld [vmem:[%s166 + $0x60] sm:$0xff]
        %v202 = vld [vmem:[%s166 + $0x68] sm:$0xff]
        %v203 = vld [vmem:[%s166 + $0x70] sm:$0xff]
        %v204 = vld [vmem:[%s166 + $0x78] sm:$0xff]
        %v205 = vadd.f32 %v189, %v190
        %206 = vadd.xlane.f32.xlu0 %v205
        %v207 = vpop.xlane.xlu0 %206
        %v208 = vadd.f32 %v191, %v192
        %209 = vadd.xlane.f32.xlu0 %v208
        %v210 = vpop.xlane.xlu0 %209
        %v211 = vadd.f32 %v193, %v194
        %212 = vadd.xlane.f32.xlu0 %v211
        %v213 = vpop.xlane.xlu0 %212
        %v214 = vadd.f32 %v195, %v196
        %215 = vadd.xlane.f32.xlu0 %v214
        %v216 = vpop.xlane.xlu0 %215
        %v217 = vadd.f32 %v197, %v198
        %218 = vadd.xlane.f32.xlu0 %v217
        %v219 = vpop.xlane.xlu0 %218
        %v220 = vadd.f32 %v199, %v200
        %221 = vadd.xlane.f32.xlu0 %v220
        %v222 = vpop.xlane.xlu0 %221
        %v223 = vadd.f32 %v201, %v202
        %224 = vadd.xlane.f32.xlu0 %v223
        %v225 = vpop.xlane.xlu0 %224
        %v226 = vadd.f32 %v203, %v204
        %227 = vadd.xlane.f32.xlu0 %v226
        %v228 = vpop.xlane.xlu0 %227
        %v229 = vrcp.pop 256.0
        %v230 = vmul.f32 %v207, %v229
        %v231 = vmul.f32 %v210, %v229
        %v232 = vmul.f32 %v213, %v229
        %v233 = vmul.f32 %v216, %v229
        %v234 = vmul.f32 %v219, %v229
        %v235 = vmul.f32 %v222, %v229
        %v236 = vmul.f32 %v225, %v229
        %v237 = vmul.f32 %v228, %v229
        %v238 = vmax.f32 %v189, %v190
        %239 = vmax.xlane.f32.xlu0 %v238
        %v240 = vpop.xlane.xlu0 %239
        %v241 = vmax.f32 %v191, %v192
        %242 = vmax.xlane.f32.xlu0 %v241
        %v243 = vpop.xlane.xlu0 %242
        %v244 = vmax.f32 %v193, %v194
        %245 = vmax.xlane.f32.xlu0 %v244
        %v246 = vpop.xlane.xlu0 %245
        %v247 = vmax.f32 %v195, %v196
        %248 = vmax.xlane.f32.xlu0 %v247
        %v249 = vpop.xlane.xlu0 %248
        %v250 = vmax.f32 %v197, %v198
        %251 = vmax.xlane.f32.xlu0 %v250
        %v252 = vpop.xlane.xlu0 %251
        %v253 = vmax.f32 %v199, %v200
        %254 = vmax.xlane.f32.xlu0 %v253
        %v255 = vpop.xlane.xlu0 %254
        %v256 = vmax.f32 %v201, %v202
        %257 = vmax.xlane.f32.xlu0 %v256
        %v258 = vpop.xlane.xlu0 %257
        %v259 = vmax.f32 %v203, %v204
        %260 = vmax.xlane.f32.xlu0 %v259
        %v261 = vpop.xlane.xlu0 %260
        %vm262 = vcmask 7168
        %v263 = vsel %vm262, %v230, %v240
        %v264 = vsel %vm262, %v231, %v243
        %v265 = vsel %vm262, %v232, %v246
        %v266 = vsel %vm262, %v233, %v249
        %v267 = vsel %vm262, %v234, %v252
        %v268 = vsel %vm262, %v235, %v255
        %v269 = vsel %vm262, %v236, %v258
        %v270 = vsel %vm262, %v237, %v261
        %v271 = vld [vmem:[%s1] sm:$0xf]
        %vm272 = vcmask 523264
        %v274 = vsel %vm272, %v271, 0
        %276 = vmatprep.subr.mxu0 0.0
        %277 = vmatpush1.msra.mxu0 0.0
        %278 = vmatprep.subr.mxu0 0.0
        %279 = vmatpush1.msra.mxu0 0.0
        %280 = vmatprep.subr.mxu0 0.0
        %281 = vmatpush1.msra.mxu0 0.0
        %282 = vmatprep.subr.mxu0 0.0
        %283 = vmatpush1.msra.mxu0 0.0
        %284 = vmatprep.subr.mxu0 0.0
        %285 = vmatpush1.msra.mxu0 0.0
        %286 = vmatprep.subr.mxu0 0.0
        %287 = vmatpush1.msra.mxu0 0.0
        %288 = vmatprep.subr.mxu0 0.0
        %289 = vmatpush1.msra.mxu0 0.0
        %290 = vmatprep.subr.mxu0 0.0
        %291 = vmatpush1.msra.mxu0 0.0
        %292 = vmatprep.subr.mxu0 0.0
        %293 = vmatpush1.msra.mxu0 %v270
        %294 = vmatprep.subr.mxu0 0.0
        %295 = vmatpush1.msra.mxu0 %v269
        %296 = vmatprep.subr.mxu0 0.0
        %297 = vmatpush1.msra.mxu0 %v268
        %298 = vmatprep.subr.mxu0 0.0
        %299 = vmatpush1.msra.mxu0 %v267
        %300 = vmatprep.subr.mxu0 0.0
        %301 = vmatpush1.msra.mxu0 %v266
        %302 = vmatprep.subr.mxu0 0.0
        %303 = vmatpush1.msra.mxu0 %v265
        %304 = vmatprep.subr.mxu0 0.0
        %305 = vmatpush1.msra.mxu0 %v264
        %306 = vmatprep.subr.mxu0 0.0
        %307 = vmatpush1.msra.mxu0 %v263
        %308 = vmatprep.subr.mxu0 0.0
        %309 = vmatpush2.msra.mxu0 0.0
        %310 = vmatprep.subr.mxu0 0.0
        %311 = vmatpush2.msra.mxu0 0.0
        %312 = vmatprep.subr.mxu0 0.0
        %313 = vmatpush2.msra.mxu0 0.0
        %314 = vmatprep.subr.mxu0 0.0
        %315 = vmatpush2.msra.mxu0 0.0
        %316 = vmatprep.subr.mxu0 0.0
        %317 = vmatpush2.msra.mxu0 0.0
        %318 = vmatprep.subr.mxu0 0.0
        %319 = vmatpush2.msra.mxu0 0.0
        %320 = vmatprep.subr.mxu0 0.0
        %321 = vmatpush2.msra.mxu0 0.0
        %322 = vmatprep.subr.mxu0 0.0
        %323 = vmatpush2.msra.mxu0 0.0
        %324 = vmatprep.subr.mxu0 0.0
        %325 = vmatpush2.msra.mxu0 0.0
        %326 = vmatprep.subr.mxu0 0.0
        %327 = vmatpush2.msra.mxu0 0.0
        %328 = vmatprep.subr.mxu0 0.0
        %329 = vmatpush2.msra.mxu0 0.0
        %330 = vmatprep.subr.mxu0 0.0
        %331 = vmatpush2.msra.mxu0 0.0
        %332 = vmatprep.subr.mxu0 0.0
        %333 = vmatpush2.msra.mxu0 0.0
        %334 = vmatprep.subr.mxu0 0.0
        %335 = vmatpush2.msra.mxu0 0.0
        %336 = vmatprep.subr.mxu0 0.0
        %337 = vmatpush2.msra.mxu0 0.0
        %338 = vmatprep.subr.mxu0 0.0
        %339 = vmatpush2.msra.mxu0 0.0
        %340 = vmatprep.mubr.f32.mxu0 0.0
        %341 = vmatmul.mubr.f32.gmra.mxu0 %v274
        %v342 = vpop.f32.mrf.mxu0
        %v343 = vadd.f32 0.0, %v342
        %v344 = vpop.f32.mrf.mxu0
        %345 = vdwg.mxu0
        %v346 = vmax.f32 %v343, 0.0
        %v347 = vld [vmem:[%s2] sm:$0xff]
        %v348 = vld [vmem:[%s2 + $0x8] sm:$0xff]
        %v349 = vld [vmem:[%s2 + $0x10] sm:$0xff]
        %v350 = vld [vmem:[%s2 + $0x18] sm:$0xff]
        %v351 = vld [vmem:[%s2 + $0x20] sm:$0xff]
        %v352 = vld [vmem:[%s2 + $0x28] sm:$0xff]
        %v353 = vld [vmem:[%s2 + $0x30] sm:$0xff]
        %v354 = vld [vmem:[%s2 + $0x38] sm:$0xff]
        %vm355 = vcmask 31744
        %v357 = vsel %vm355, %v347, 0
        %v360 = vsel %vm355, %v348, 0
        %v363 = vsel %vm355, %v349, 0
        %v366 = vsel %vm355, %v350, 0
        %v369 = vsel %vm355, %v351, 0
        %v372 = vsel %vm355, %v352, 0
        %v375 = vsel %vm355, %v353, 0
        %v378 = vsel %vm355, %v354, 0
        %vm380 = vcmask 1043456
        %v382 = vsel %vm380, %v346, 0
        %384 = vmatprep.subr.mxu0 0.0
        %385 = vmatpush1.msra.mxu0 0.0
        %386 = vmatprep.subr.mxu0 0.0
        %387 = vmatpush1.msra.mxu0 0.0
        %388 = vmatprep.subr.mxu0 0.0
        %389 = vmatpush1.msra.mxu0 0.0
        %390 = vmatprep.subr.mxu0 0.0
        %391 = vmatpush1.msra.mxu0 0.0
        %392 = vmatprep.subr.mxu0 0.0
        %393 = vmatpush1.msra.mxu0 0.0
        %394 = vmatprep.subr.mxu0 0.0
        %395 = vmatpush1.msra.mxu0 0.0
        %396 = vmatprep.subr.mxu0 0.0
        %397 = vmatpush1.msra.mxu0 0.0
        %398 = vmatprep.subr.mxu0 0.0
        %399 = vmatpush1.msra.mxu0 0.0
        %400 = vmatprep.subr.mxu0 0.0
        %401 = vmatpush1.msra.mxu0 0.0
        %402 = vmatprep.subr.mxu0 0.0
        %403 = vmatpush1.msra.mxu0 0.0
        %404 = vmatprep.subr.mxu0 0.0
        %405 = vmatpush1.msra.mxu0 0.0
        %406 = vmatprep.subr.mxu0 0.0
        %407 = vmatpush1.msra.mxu0 0.0
        %408 = vmatprep.subr.mxu0 0.0
        %409 = vmatpush1.msra.mxu0 0.0
        %410 = vmatprep.subr.mxu0 0.0
        %411 = vmatpush1.msra.mxu0 0.0
        %412 = vmatprep.subr.mxu0 0.0
        %413 = vmatpush1.msra.mxu0 0.0
        %414 = vmatprep.subr.mxu0 0.0
        %415 = vmatpush1.msra.mxu0 %v382
        %416 = vmatprep.subr.mxu0 0.0
        %417 = vmatpush2.msra.mxu0 0.0
        %418 = vmatprep.subr.mxu0 0.0
        %419 = vmatpush2.msra.mxu0 0.0
        %420 = vmatprep.subr.mxu0 0.0
        %421 = vmatpush2.msra.mxu0 0.0
        %422 = vmatprep.subr.mxu0 0.0
        %423 = vmatpush2.msra.mxu0 0.0
        %424 = vmatprep.subr.mxu0 0.0
        %425 = vmatpush2.msra.mxu0 0.0
        %426 = vmatprep.subr.mxu0 0.0
        %427 = vmatpush2.msra.mxu0 0.0
        %428 = vmatprep.subr.mxu0 0.0
        %429 = vmatpush2.msra.mxu0 0.0
        %430 = vmatprep.subr.mxu0 0.0
        %431 = vmatpush2.msra.mxu0 0.0
        %432 = vmatprep.subr.mxu0 0.0
        %433 = vmatpush2.msra.mxu0 0.0
        %434 = vmatprep.subr.mxu0 0.0
        %435 = vmatpush2.msra.mxu0 0.0
        %436 = vmatprep.subr.mxu0 0.0
        %437 = vmatpush2.msra.mxu0 0.0
        %438 = vmatprep.subr.mxu0 0.0
        %439 = vmatpush2.msra.mxu0 0.0
        %440 = vmatprep.subr.mxu0 0.0
        %441 = vmatpush2.msra.mxu0 0.0
        %442 = vmatprep.subr.mxu0 0.0
        %443 = vmatpush2.msra.mxu0 0.0
        %444 = vmatprep.subr.mxu0 0.0
        %445 = vmatpush2.msra.mxu0 0.0
        %446 = vmatprep.subr.mxu0 0.0
        %447 = vmatpush2.msra.mxu0 0.0
        %448 = vmatprep.mubr.f32.mxu0 0.0
        %449 = vmatmul.mubr.f32.gmra.mxu0 %v357
        %v450 = vpop.f32.mrf.mxu0
        %v451 = vadd.f32 0.0, %v450
        %v452 = vpop.f32.mrf.mxu0
        %453 = vmatprep.mubr.f32.mxu0 0.0
        %454 = vmatmul.mubr.f32.gmra.mxu0 %v360
        %v455 = vpop.f32.mrf.mxu0
        %v456 = vadd.f32 0.0, %v455
        %v457 = vpop.f32.mrf.mxu0
        %458 = vmatprep.mubr.f32.mxu0 0.0
        %459 = vmatmul.mubr.f32.gmra.mxu0 %v363
        %v460 = vpop.f32.mrf.mxu0
        %v461 = vadd.f32 0.0, %v460
        %v462 = vpop.f32.mrf.mxu0
        %463 = vmatprep.mubr.f32.mxu0 0.0
        %464 = vmatmul.mubr.f32.gmra.mxu0 %v366
        %v465 = vpop.f32.mrf.mxu0
        %v466 = vadd.f32 0.0, %v465
        %v467 = vpop.f32.mrf.mxu0
        %468 = vmatprep.mubr.f32.mxu0 0.0
        %469 = vmatmul.mubr.f32.gmra.mxu0 %v369
        %v470 = vpop.f32.mrf.mxu0
        %v471 = vadd.f32 0.0, %v470
        %v472 = vpop.f32.mrf.mxu0
        %473 = vmatprep.mubr.f32.mxu0 0.0
        %474 = vmatmul.mubr.f32.gmra.mxu0 %v372
        %v475 = vpop.f32.mrf.mxu0
        %v476 = vadd.f32 0.0, %v475
        %v477 = vpop.f32.mrf.mxu0
        %478 = vmatprep.mubr.f32.mxu0 0.0
        %479 = vmatmul.mubr.f32.gmra.mxu0 %v375
        %v480 = vpop.f32.mrf.mxu0
        %v481 = vadd.f32 0.0, %v480
        %v482 = vpop.f32.mrf.mxu0
        %483 = vmatprep.mubr.f32.mxu0 0.0
        %484 = vmatmul.mubr.f32.gmra.mxu0 %v378
        %v485 = vpop.f32.mrf.mxu0
        %v486 = vadd.f32 0.0, %v485
        %v487 = vpop.f32.mrf.mxu0
        %488 = vdwg.mxu0
        %497 = vrot.lane.b32.xlu0 %v451, 127
        %v498 = vpop.permute.xlu0 %497
        %499 = vrot.lane.b32.xlu0 %v456, 127
        %v500 = vpop.permute.xlu0 %499
        %501 = vrot.lane.b32.xlu0 %v461, 127
        %v502 = vpop.permute.xlu0 %501
        %503 = vrot.lane.b32.xlu0 %v466, 127
        %v504 = vpop.permute.xlu0 %503
        %505 = vrot.lane.b32.xlu0 %v471, 127
        %v506 = vpop.permute.xlu0 %505
        %507 = vrot.lane.b32.xlu0 %v476, 127
        %v508 = vpop.permute.xlu0 %507
        %509 = vrot.lane.b32.xlu0 %v481, 127
        %v510 = vpop.permute.xlu0 %509
        %511 = vrot.lane.b32.xlu0 %v486, 127
        %v512 = vpop.permute.xlu0 %511
        %v521 = vadd.f32 %v451, %v498
        %v522 = vadd.f32 %v456, %v500
        %v523 = vadd.f32 %v461, %v502
        %v524 = vadd.f32 %v466, %v504
        %v525 = vadd.f32 %v471, %v506
        %v526 = vadd.f32 %v476, %v508
        %v527 = vadd.f32 %v481, %v510
        %v528 = vadd.f32 %v486, %v512
        %v529 = vxor.u32 %v521, 2147483648
        %v530 = vxor.u32 %v522, 2147483648
        %v531 = vxor.u32 %v523, 2147483648
        %v532 = vxor.u32 %v524, 2147483648
        %v533 = vxor.u32 %v525, 2147483648
        %v534 = vxor.u32 %v526, 2147483648
        %v535 = vxor.u32 %v527, 2147483648
        %v536 = vxor.u32 %v528, 2147483648
        %v537 = vmul.f32 %v529, 1.442695
        %v538 = vpow.pop %v537
        %v539 = vmul.f32 %v530, 1.442695
        %v540 = vpow.pop %v539
        %v541 = vmul.f32 %v531, 1.442695
        %v542 = vpow.pop %v541
        %v543 = vmul.f32 %v532, 1.442695
        %v544 = vpow.pop %v543
        %v545 = vmul.f32 %v533, 1.442695
        %v546 = vpow.pop %v545
        %v547 = vmul.f32 %v534, 1.442695
        %v548 = vpow.pop %v547
        %v549 = vmul.f32 %v535, 1.442695
        %v550 = vpow.pop %v549
        %v551 = vmul.f32 %v536, 1.442695
        %v552 = vpow.pop %v551
        %v553 = vadd.f32 %v538, 1.0
        %v554 = vadd.f32 %v540, 1.0
        %v555 = vadd.f32 %v542, 1.0
        %v556 = vadd.f32 %v544, 1.0
        %v557 = vadd.f32 %v546, 1.0
        %v558 = vadd.f32 %v548, 1.0
        %v559 = vadd.f32 %v550, 1.0
        %v560 = vadd.f32 %v552, 1.0
        %v561 = vrcp.pop %v553
        %v562 = vmul.f32 1.0, %v561
        %v563 = vrcp.pop %v554
        %v564 = vmul.f32 1.0, %v563
        %v565 = vrcp.pop %v555
        %v566 = vmul.f32 1.0, %v565
        %v567 = vrcp.pop %v556
        %v568 = vmul.f32 1.0, %v567
        %v569 = vrcp.pop %v557
        %v570 = vmul.f32 1.0, %v569
        %v571 = vrcp.pop %v558
        %v572 = vmul.f32 1.0, %v571
        %v573 = vrcp.pop %v559
        %v574 = vmul.f32 1.0, %v573
        %v575 = vrcp.pop %v560
        %v576 = vmul.f32 1.0, %v575
        %578 = vset.pattern.permute.xlu0 0
        %579 = vperm.xlu0 %578, %v562
        %v580 = vpop.permute.xlu0 %579
        %583 = vset.pattern.permute.xlu0 0
        %584 = vperm.xlu0 %583, %v564
        %v585 = vpop.permute.xlu0 %584
        %588 = vset.pattern.permute.xlu0 0
        %589 = vperm.xlu0 %588, %v566
        %v590 = vpop.permute.xlu0 %589
        %593 = vset.pattern.permute.xlu0 0
        %594 = vperm.xlu0 %593, %v568
        %v595 = vpop.permute.xlu0 %594
        %598 = vset.pattern.permute.xlu0 0
        %599 = vperm.xlu0 %598, %v570
        %v600 = vpop.permute.xlu0 %599
        %603 = vset.pattern.permute.xlu0 0
        %604 = vperm.xlu0 %603, %v572
        %v605 = vpop.permute.xlu0 %604
        %608 = vset.pattern.permute.xlu0 0
        %609 = vperm.xlu0 %608, %v574
        %v610 = vpop.permute.xlu0 %609
        %613 = vset.pattern.permute.xlu0 0
        %614 = vperm.xlu0 %613, %v576
        %v615 = vpop.permute.xlu0 %614
        %v617 = vmul.f32 %v189, %v580
        %v618 = vmul.f32 %v190, %v580
        %v619 = vmul.f32 %v191, %v585
        %v620 = vmul.f32 %v192, %v585
        %v621 = vmul.f32 %v193, %v590
        %v622 = vmul.f32 %v194, %v590
        %v623 = vmul.f32 %v195, %v595
        %v624 = vmul.f32 %v196, %v595
        %v625 = vmul.f32 %v197, %v600
        %v626 = vmul.f32 %v198, %v600
        %v627 = vmul.f32 %v199, %v605
        %v628 = vmul.f32 %v200, %v605
        %v629 = vmul.f32 %v201, %v610
        %v630 = vmul.f32 %v202, %v610
        %v631 = vmul.f32 %v203, %v615
        %v632 = vmul.f32 %v204, %v615
        %633 = vst [vmem:[%s188] sm:$0xff] %v617
        %634 = vst [vmem:[%s188 + $0x8] sm:$0xff] %v618
        %635 = vst [vmem:[%s188 + $0x10] sm:$0xff] %v619
        %636 = vst [vmem:[%s188 + $0x18] sm:$0xff] %v620
        %637 = vst [vmem:[%s188 + $0x20] sm:$0xff] %v621
        %638 = vst [vmem:[%s188 + $0x28] sm:$0xff] %v622
        %639 = vst [vmem:[%s188 + $0x30] sm:$0xff] %v623
        %640 = vst [vmem:[%s188 + $0x38] sm:$0xff] %v624
        %641 = vst [vmem:[%s188 + $0x40] sm:$0xff] %v625
        %642 = vst [vmem:[%s188 + $0x48] sm:$0xff] %v626
        %643 = vst [vmem:[%s188 + $0x50] sm:$0xff] %v627
        %644 = vst [vmem:[%s188 + $0x58] sm:$0xff] %v628
        %645 = vst [vmem:[%s188 + $0x60] sm:$0xff] %v629
        %646 = vst [vmem:[%s188 + $0x68] sm:$0xff] %v630
        %647 = vst [vmem:[%s188 + $0x70] sm:$0xff] %v631
        %648 = vst [vmem:[%s188 + $0x78] sm:$0xff] %v632
        %s649 = sand.u32 %s96, 1
        %s650 = scalar_lea.sflag [#allocation4], %s649
        %s651 = sand.u32 %s96, 1
        %s652 = smul.addr %s651, 128
        %s653 = scalar_lea.vmem [#allocation5], %s652
        // Predicated region
        $region37: #{tpu_custom_call.1} parent=31 // pred_check
          %p654 = pneg %p106
        $region38: #{tpu_custom_call.1} parent=31 // pred_check_branch
          %656 = sbr.rel (%p654) target = $region40
        $region39: #{tpu_custom_call.1} parent=31 // pred_region
          %s658 = ssub.s32 2048, 2048
          %659 = vsyncadd %s650, %s658
          %s660 = smul.addr %s20, 16
          %s661 = smul.addr %s660, 128
          %s662 = scalar_lea.hbm %s3, %s661
          %s663 = sshll.u32 %s653, 4
          %s664 = int_to_ptr.vmem [resolvable:$true] %s663
          %669 = dma.vmem_to_hbm [thread:$0]  %s664, 2048, %s662, %s650, 256, 256, 16
        $region40: #{tpu_custom_call.1} parent=31 // pred_fallthru
          _
      $region32: #{tpu_custom_call.1} parent=5 // pred_fallthru
        _
      %p670 = scmp.le.s32.totalorder 2, %s15
      // Predicated region
      $region41: #{tpu_custom_call.1} parent=5 // pred_check
        %p671 = pneg %p670
      $region42: #{tpu_custom_call.1} parent=5 // pred_check_branch
        %673 = sbr.rel (%p671) target = $region44
      $region43: #{tpu_custom_call.1} parent=5 // pred_region
        %s674 = ssub.s32 %s15, 2
        // Predicated region
        $region45: #{tpu_custom_call.1} parent=43 // pred_check
          %p675 = pneg %p112
        $region46: #{tpu_custom_call.1} parent=43 // pred_check_branch
          %677 = sbr.rel (%p675) target = $region48
        $region47: #{tpu_custom_call.1} parent=43 // pred_region
          %s678 = sand.u32 %s97, 1
          %s679 = scalar_lea.sflag [#allocation4], %s678
          %s680 = sand.u32 %s97, 1
          %s681 = smul.addr %s680, 128
          %s682 = scalar_lea.vmem [#allocation5], %s681
          %683 = dma.done %s679, 2048
        $region48: #{tpu_custom_call.1} parent=43 // pred_fallthru
          _
      $region44: #{tpu_custom_call.1} parent=5 // pred_fallthru
        _
    $region6: #{tpu_custom_call.1} parent=1 // loop_footer
      %s19 = sadd.s32 1, %s15
    $region7: #{tpu_custom_call.1} parent=1 // loop_footer_branch
      %14 = sbr.rel target = $region3
    $region8: #{tpu_custom_call.1} parent=1 // loop_exit
      _
    %684 = vsyncpa [#allocation3], 1
    %s685 = scalar_lea.sflag [#allocation3], 1
    %686 = vsyncpa %s685, 1
    %687 = vsyncpa [#allocation4], 1
    %s688 = scalar_lea.sflag [#allocation4], 1
    %689 = vsyncpa %s688, 1

</llo_original>
